<compile_context>
chip_gen: v7x
topology: tpu7x:2x2x1
jax: 0.10.0
libtpu: 0.0.40
codegen_flags: <defaults>
</compile_context>

<pallas_src>
import functools

import jax
import jax.numpy as jnp
from jax.experimental import pallas as pl
from jax.experimental.pallas import tpu as pltpu


N_HIDDEN1 = 128   # feature / fused layer-1 width
N_HIDDEN2 = 64    # fused layer-2 width (32 adv + 32 val)
N_OUT = 128       # lane-dense fused layer-3 / output-slab width


def dueling_qnet_kernel(state_ref, wf_ref, bf_ref, w1_ref, b1_ref,
                        w2_ref, b2_ref, w3_ref, b3_ref, out_ref, *, action_size):
    f32 = jnp.float32
    bf16 = jnp.bfloat16

    # feature = ReLU(state @ Wf + bf)                            (TB, 128)
    x = jnp.dot(state_ref[...].astype(bf16), wf_ref[...],
                preferred_element_type=f32) + bf_ref[...]
    x = jnp.maximum(x, 0.0)

    # fused layer 1: [adv_h1 || val_h1]                          (TB, 128)
    h = jnp.dot(x.astype(bf16), w1_ref[...],
                preferred_element_type=f32) + b1_ref[...]
    h = jnp.maximum(h, 0.0)

    # fused layer 2 (block-diagonal): [adv_h2 || val_h2]         (TB, 64)
    h = jnp.dot(h.astype(bf16), w2_ref[...],
                preferred_element_type=f32) + b2_ref[...]
    h = jnp.maximum(h, 0.0)

    # fused layer 3 (block-diagonal, lane-padded to 128):
    #   lanes 0..A-1 = advantage, lane A = value, lanes A+1.. = exact zeros
    h = jnp.dot(h.astype(bf16), w3_ref[...],
                preferred_element_type=f32) + b3_ref[...]       # (TB, 128)

    lane = jax.lax.broadcasted_iota(jnp.int32, h.shape, 1)
    adv_mask = lane < action_size
    val_col = jnp.sum(jnp.where(lane == action_size, h, 0.0),
                      axis=1, keepdims=True)                    # (TB, 1) value
    adv_rowsum = jnp.sum(jnp.where(adv_mask, h, 0.0),
                         axis=1, keepdims=True)                 # (TB, 1) per-row adv sum

    # Lane-dense output slab:
    #   lanes 0..A-1  : value + advantage  (global -mean applied in the wrapper)
    #   lane A        : per-row advantage sum (feeds the GLOBAL advantage mean)
    #   lanes A+1..127: zeros
    out = jnp.where(adv_mask, h + val_col, 0.0)
    out = jnp.where(lane == action_size, adv_rowsum, out)
    out_ref[...] = out.astype(out_ref.dtype)


def _round_up(x, m):
    return (x + m - 1) // m * m


def dueling_qnet_forward(state, fused_params, action_size, *, tile_batch=1024):
    """state: (batch, state_size) f32; fused_params: output of fuse_params()."""
    batch, state_size = state.shape

    tb = _round_up(min(int(tile_batch), _round_up(batch, 8)), 8)
    b_pad = _round_up(batch, tb)
    num_tiles = b_pad // tb
    if b_pad != batch:
        # Zero-pad so every grid step sees a full (tb, state_size) block.
        state = jnp.pad(state, ((0, b_pad - batch), (0, 0)))

    def fixed(arr):  # weights/biases: full-array block, VMEM-resident across grid steps
        return pl.BlockSpec(arr.shape, lambda i: (0, 0))

    wf, bf, w1, b1, w2, b2, w3, b3 = fused_params
    kernel = functools.partial(dueling_qnet_kernel, action_size=action_size)

    slab = pl.pallas_call(
        kernel,
        out_shape=jax.ShapeDtypeStruct((b_pad, N_OUT), jnp.float32),
        grid=(num_tiles,),
        in_specs=[
            pl.BlockSpec((tb, state_size), lambda i: (i, 0)),
            fixed(wf), fixed(bf),
            fixed(w1), fixed(b1),
            fixed(w2), fixed(b2),
            fixed(w3), fixed(b3),
        ],
        out_specs=pl.BlockSpec((tb, N_OUT), lambda i: (i, 0)),
        compiler_params=pltpu.CompilerParams(dimension_semantics=("parallel",)),
    )(state, wf, bf, w1, b1, w2, b2, w3, b3)

    # Finalize the dueling combine's GLOBAL advantage mean over the real batch only.
    q_plus_val = slab[:batch, :action_size]              # value + advantage
    adv_total = jnp.sum(slab[:batch, action_size])       # sum(advantage) over batch*actions
    return q_plus_val - adv_total / (batch * action_size)


def init_params(state_size, action_size, seed=0):
    """PyTorch-Linear-style uniform init; weights stored (in, out), biases (1, out)."""
    key = jax.random.PRNGKey(seed)
    dims = [
        (state_size, 128),                         # feature
        (128, 64), (64, 32), (32, action_size),    # advantage
        (128, 64), (64, 32), (32, 1),              # value
    ]
    params = []
    for fan_in, fan_out in dims:
        key, kw, kb = jax.random.split(key, 3)
        bound = 1.0 / jnp.sqrt(jnp.float32(fan_in))
        w = jax.random.uniform(kw, (fan_in, fan_out), jnp.float32, -bound, bound)
        b = jax.random.uniform(kb, (1, fan_out), jnp.float32, -bound, bound)
        params.extend([w, b])
    return tuple(params)


def _block_diag(a, b):
    top = jnp.concatenate([a, jnp.zeros((a.shape[0], b.shape[1]), a.dtype)], axis=1)
    bot = jnp.concatenate([jnp.zeros((b.shape[0], a.shape[1]), b.dtype), b], axis=1)
    return jnp.concatenate([top, bot], axis=0)


def fuse_params(params, matmul_dtype=jnp.bfloat16):
    """Repack per-branch weights into the fused [advantage || value] layout.

    Weights are cast to `matmul_dtype` (bf16) for the MXU; biases stay f32 (added on the
    VPU in f32).  W3/b3 are zero-padded to 128 output lanes for unmasked stores.
    """
    (w_f, b_f, w_a1, b_a1, w_a2, b_a2, w_a3, b_a3,
     w_v1, b_v1, w_v2, b_v2, w_v3, b_v3) = params
    action_size = w_a3.shape[1]
    pad = N_OUT - (action_size + 1)
    assert pad >= 0, "action_size + 1 must fit in the 128-lane output slab"

    wf = w_f.astype(matmul_dtype)
    w1 = jnp.concatenate([w_a1, w_v1], axis=1).astype(matmul_dtype)          # (128, 128)
    b1 = jnp.concatenate([b_a1, b_v1], axis=1)                               # (1, 128)
    w2 = _block_diag(w_a2, w_v2).astype(matmul_dtype)                        # (128, 64)
    b2 = jnp.concatenate([b_a2, b_v2], axis=1)                               # (1, 64)
    w3 = jnp.pad(_block_diag(w_a3, w_v3),
                 ((0, 0), (0, pad))).astype(matmul_dtype)                    # (64, 128)
    b3 = jnp.pad(jnp.concatenate([b_a3, b_v3], axis=1), ((0, 0), (0, pad)))  # (1, 128)
    return (wf, b_f, w1, b1, w2, b2, w3, b3)


def reference_forward_f32(state, params):
    """Pure f32 JAX reference, exactly mirroring the PyTorch module."""
    (w_f, b_f, w_a1, b_a1, w_a2, b_a2, w_a3, b_a3,
     w_v1, b_v1, w_v2, b_v2, w_v3, b_v3) = params
    x = jnp.maximum(state @ w_f + b_f, 0.0)
    a = jnp.maximum(x @ w_a1 + b_a1, 0.0)
    a = jnp.maximum(a @ w_a2 + b_a2, 0.0)
    adv = a @ w_a3 + b_a3
    v = jnp.maximum(x @ w_v1 + b_v1, 0.0)
    v = jnp.maximum(v @ w_v2 + b_v2, 0.0)
    val = v @ w_v3 + b_v3
    return val + adv - jnp.mean(adv)


def reference_forward_mixed(state, params):
    """Unfused reference with the kernel's mixed precision (bf16 MXU inputs, f32 rest)."""
    (w_f, b_f, w_a1, b_a1, w_a2, b_a2, w_a3, b_a3,
     w_v1, b_v1, w_v2, b_v2, w_v3, b_v3) = params
    bf16, f32 = jnp.bfloat16, jnp.float32

    def mm(x, w):
        return jnp.dot(x.astype(bf16), w.astype(bf16), preferred_element_type=f32)

    x = jnp.maximum(mm(state, w_f) + b_f, 0.0)
    a = jnp.maximum(mm(x, w_a1) + b_a1, 0.0)
    a = jnp.maximum(mm(a, w_a2) + b_a2, 0.0)
    adv = mm(a, w_a3) + b_a3
    v = jnp.maximum(mm(x, w_v1) + b_v1, 0.0)
    v = jnp.maximum(mm(v, w_v2) + b_v2, 0.0)
    val = mm(v, w_v3) + b_v3
    return val + adv - jnp.mean(adv)


if __name__ == "__main__":
    state_size = 16
    action_size = 4

    params = init_params(state_size, action_size, seed=0)
    fused = fuse_params(params, matmul_dtype=jnp.bfloat16)

    # --- primary small-shape run (batch=2, single grid step) ---
    batch = 2
    key = jax.random.PRNGKey(0)
    state = jax.random.normal(key, (batch, state_size), jnp.float32)

    out = dueling_qnet_forward(state, fused, action_size)
    out = jax.block_until_ready(out)
    assert out.shape == (batch, action_size)

    ref_mixed = reference_forward_mixed(state, params)
    assert jnp.allclose(out, ref_mixed, atol=2e-3, rtol=2e-3), "mismatch vs mixed-precision reference"
    ref_f32 = reference_forward_f32(state, params)
    assert jnp.allclose(out, ref_f32, atol=5e-2, rtol=5e-2), "mismatch vs f32 reference"

    # --- multi-tile run (exercises the batch grid + partial-tile padding) ---
    batch2 = 300
    key2 = jax.random.PRNGKey(1)
    state2 = jax.random.normal(key2, (batch2, state_size), jnp.float32)
    out2 = jax.block_until_ready(
        dueling_qnet_forward(state2, fused, action_size, tile_batch=128))
    assert out2.shape == (batch2, action_size)
    ref2 = reference_forward_mixed(state2, params)
    assert jnp.allclose(out2, ref2, atol=2e-3, rtol=2e-3), "multi-tile mismatch vs mixed reference"

    print("KERNEL_OK")
</pallas_src>

<mosaic_0001>
module attributes {stable_mosaic.version = 11 : i64} {
  func.func @dueling_qnet_kernel(%arg0: i32, %arg1: memref<8x16xf32, #tpu.memory_space<vmem>>, %arg2: memref<16x128xbf16, #tpu.memory_space<vmem>>, %arg3: memref<1x128xf32, #tpu.memory_space<vmem>>, %arg4: memref<128x128xbf16, #tpu.memory_space<vmem>>, %arg5: memref<1x128xf32, #tpu.memory_space<vmem>>, %arg6: memref<128x64xbf16, #tpu.memory_space<vmem>>, %arg7: memref<1x64xf32, #tpu.memory_space<vmem>>, %arg8: memref<64x128xbf16, #tpu.memory_space<vmem>>, %arg9: memref<1x128xf32, #tpu.memory_space<vmem>>, %arg10: memref<8x128xf32, #tpu.memory_space<vmem>>) attributes {dimension_semantics = [#tpu.dimension_semantics<parallel>], iteration_bounds = array<i64: 1>, scalar_prefetch = 0 : i64, scratch_operands = 0 : i64, tpu.core_type = #tpu.core_type<tc>, window_params = [{transform_indices = @transform_0, window_bounds = array<i64: 8, 16>}, {pipeline_mode = #tpu.pipeline_mode<synchronous>, transform_indices = @transform_1, window_bounds = array<i64: 16, 128>}, {pipeline_mode = #tpu.pipeline_mode<synchronous>, transform_indices = @transform_2, window_bounds = array<i64: 1, 128>}, {pipeline_mode = #tpu.pipeline_mode<synchronous>, transform_indices = @transform_3, window_bounds = array<i64: 128, 128>}, {pipeline_mode = #tpu.pipeline_mode<synchronous>, transform_indices = @transform_4, window_bounds = array<i64: 1, 128>}, {pipeline_mode = #tpu.pipeline_mode<synchronous>, transform_indices = @transform_5, window_bounds = array<i64: 128, 64>}, {pipeline_mode = #tpu.pipeline_mode<synchronous>, transform_indices = @transform_6, window_bounds = array<i64: 1, 64>}, {pipeline_mode = #tpu.pipeline_mode<synchronous>, transform_indices = @transform_7, window_bounds = array<i64: 64, 128>}, {pipeline_mode = #tpu.pipeline_mode<synchronous>, transform_indices = @transform_8, window_bounds = array<i64: 1, 128>}, {transform_indices = @transform_9, window_bounds = array<i64: 8, 128>}]} {
    %c0 = arith.constant 0 : index
    %c0_0 = arith.constant 0 : index
    %0 = vector.load %arg1[%c0, %c0_0] : memref<8x16xf32, #tpu.memory_space<vmem>>, vector<8x16xf32>
    %1 = arith.truncf %0 : vector<8x16xf32> to vector<8x16xbf16>
    %c0_1 = arith.constant 0 : index
    %c0_2 = arith.constant 0 : index
    %2 = vector.load %arg2[%c0_1, %c0_2] : memref<16x128xbf16, #tpu.memory_space<vmem>>, vector<16x128xbf16>
    %cst = arith.constant dense<0.000000e+00> : vector<8x128xf32>
    %3 = tpu.matmul %1, %2, %cst {dimension_numbers = #tpu.dot_dimension_numbers<[1], [0], [0], [1], [0, 0, 1, 1], [], []>} : vector<8x16xbf16>, vector<16x128xbf16>, vector<8x128xf32> -> vector<8x128xf32>
    %c0_3 = arith.constant 0 : index
    %c0_4 = arith.constant 0 : index
    %4 = vector.load %arg3[%c0_3, %c0_4] : memref<1x128xf32, #tpu.memory_space<vmem>>, vector<1x128xf32>
    %5 = vector.broadcast %4 : vector<1x128xf32> to vector<8x128xf32>
    %6 = arith.addf %3, %5 : vector<8x128xf32>
    %cst_5 = arith.constant 0.000000e+00 : f32
    %7 = vector.broadcast %cst_5 : f32 to vector<8x128xf32>
    %8 = arith.maximumf %6, %7 : vector<8x128xf32>
    %9 = arith.truncf %8 : vector<8x128xf32> to vector<8x128xbf16>
    %c0_6 = arith.constant 0 : index
    %c0_7 = arith.constant 0 : index
    %10 = vector.load %arg4[%c0_6, %c0_7] : memref<128x128xbf16, #tpu.memory_space<vmem>>, vector<128x128xbf16>
    %cst_8 = arith.constant dense<0.000000e+00> : vector<8x128xf32>
    %11 = tpu.matmul %9, %10, %cst_8 {dimension_numbers = #tpu.dot_dimension_numbers<[1], [0], [0], [1], [0, 0, 1, 1], [], []>} : vector<8x128xbf16>, vector<128x128xbf16>, vector<8x128xf32> -> vector<8x128xf32>
    %c0_9 = arith.constant 0 : index
    %c0_10 = arith.constant 0 : index
    %12 = vector.load %arg5[%c0_9, %c0_10] : memref<1x128xf32, #tpu.memory_space<vmem>>, vector<1x128xf32>
    %13 = vector.broadcast %12 : vector<1x128xf32> to vector<8x128xf32>
    %14 = arith.addf %11, %13 : vector<8x128xf32>
    %cst_11 = arith.constant 0.000000e+00 : f32
    %15 = vector.broadcast %cst_11 : f32 to vector<8x128xf32>
    %16 = arith.maximumf %14, %15 : vector<8x128xf32>
    %17 = arith.truncf %16 : vector<8x128xf32> to vector<8x128xbf16>
    %c0_12 = arith.constant 0 : index
    %c0_13 = arith.constant 0 : index
    %18 = vector.load %arg6[%c0_12, %c0_13] : memref<128x64xbf16, #tpu.memory_space<vmem>>, vector<128x64xbf16>
    %cst_14 = arith.constant dense<0.000000e+00> : vector<8x64xf32>
    %19 = tpu.matmul %17, %18, %cst_14 {dimension_numbers = #tpu.dot_dimension_numbers<[1], [0], [0], [1], [0, 0, 1, 1], [], []>} : vector<8x128xbf16>, vector<128x64xbf16>, vector<8x64xf32> -> vector<8x64xf32>
    %c0_15 = arith.constant 0 : index
    %c0_16 = arith.constant 0 : index
    %20 = vector.load %arg7[%c0_15, %c0_16] : memref<1x64xf32, #tpu.memory_space<vmem>>, vector<1x64xf32>
    %21 = vector.broadcast %20 : vector<1x64xf32> to vector<8x64xf32>
    %22 = arith.addf %19, %21 : vector<8x64xf32>
    %cst_17 = arith.constant 0.000000e+00 : f32
    %23 = vector.broadcast %cst_17 : f32 to vector<8x64xf32>
    %24 = arith.maximumf %22, %23 : vector<8x64xf32>
    %25 = arith.truncf %24 : vector<8x64xf32> to vector<8x64xbf16>
    %c0_18 = arith.constant 0 : index
    %c0_19 = arith.constant 0 : index
    %26 = vector.load %arg8[%c0_18, %c0_19] : memref<64x128xbf16, #tpu.memory_space<vmem>>, vector<64x128xbf16>
    %cst_20 = arith.constant dense<0.000000e+00> : vector<8x128xf32>
    %27 = tpu.matmul %25, %26, %cst_20 {dimension_numbers = #tpu.dot_dimension_numbers<[1], [0], [0], [1], [0, 0, 1, 1], [], []>} : vector<8x64xbf16>, vector<64x128xbf16>, vector<8x128xf32> -> vector<8x128xf32>
    %c0_21 = arith.constant 0 : index
    %c0_22 = arith.constant 0 : index
    %28 = vector.load %arg9[%c0_21, %c0_22] : memref<1x128xf32, #tpu.memory_space<vmem>>, vector<1x128xf32>
    %29 = vector.broadcast %28 : vector<1x128xf32> to vector<8x128xf32>
    %30 = arith.addf %27, %29 : vector<8x128xf32>
    %31 = tpu.iota {dimensions = array<i32: 1>} : vector<8x128xi32>
    %c4_i32 = arith.constant 4 : i32
    %32 = vector.broadcast %c4_i32 : i32 to vector<8x128xi32>
    %33 = arith.cmpi slt, %31, %32 : vector<8x128xi32>
    %c4_i32_23 = arith.constant 4 : i32
    %34 = vector.broadcast %c4_i32_23 : i32 to vector<8x128xi32>
    %35 = arith.cmpi eq, %31, %34 : vector<8x128xi32>
    %cst_24 = arith.constant 0.000000e+00 : f32
    %36 = vector.broadcast %cst_24 : f32 to vector<8x128xf32>
    %37 = arith.select %35, %30, %36 : vector<8x128xi1>, vector<8x128xf32>
    %cst_25 = arith.constant dense<0.000000e+00> : vector<8xf32>
    %38 = vector.multi_reduction <add>, %37, %cst_25 [1] : vector<8x128xf32> to vector<8xf32>
    %39 = vector.shape_cast %38 : vector<8xf32> to vector<8x1xf32>
    %cst_26 = arith.constant 0.000000e+00 : f32
    %40 = vector.broadcast %cst_26 : f32 to vector<8x128xf32>
    %41 = arith.select %33, %30, %40 : vector<8x128xi1>, vector<8x128xf32>
    %cst_27 = arith.constant dense<0.000000e+00> : vector<8xf32>
    %42 = vector.multi_reduction <add>, %41, %cst_27 [1] : vector<8x128xf32> to vector<8xf32>
    %43 = vector.shape_cast %42 : vector<8xf32> to vector<8x1xf32>
    %44 = vector.broadcast %39 : vector<8x1xf32> to vector<8x128xf32>
    %45 = arith.addf %30, %44 : vector<8x128xf32>
    %cst_28 = arith.constant 0.000000e+00 : f32
    %46 = vector.broadcast %cst_28 : f32 to vector<8x128xf32>
    %47 = arith.select %33, %45, %46 : vector<8x128xi1>, vector<8x128xf32>
    %c4_i32_29 = arith.constant 4 : i32
    %48 = vector.broadcast %c4_i32_29 : i32 to vector<8x128xi32>
    %49 = arith.cmpi eq, %31, %48 : vector<8x128xi32>
    %50 = vector.shape_cast %43 : vector<8x1xf32> to vector<8x1xf32>
    %51 = vector.broadcast %50 : vector<8x1xf32> to vector<8x128xf32>
    %52 = arith.select %49, %51, %47 : vector<8x128xi1>, vector<8x128xf32>
    %c0_30 = arith.constant 0 : index
    %c0_31 = arith.constant 0 : index
    %53 = vector.load %arg10[%c0_30, %c0_31] : memref<8x128xf32, #tpu.memory_space<vmem>>, vector<8x128xf32>
    tpu.vector_store %arg10[%c0_30, %c0_31], %52 {strides = array<i32>} : memref<8x128xf32, #tpu.memory_space<vmem>>, vector<8x128xf32>,
    return
  }
  func.func @transform_0(%arg0: i32) -> (i32, i32) {
    %c0_i32 = arith.constant 0 : i32
    %c0_i32_0 = arith.constant 0 : i32
    return %arg0, %c0_i32 : i32, i32
  }
  func.func @transform_1(%arg0: i32) -> (i32, i32) {
    %c0_i32 = arith.constant 0 : i32
    %c0_i32_0 = arith.constant 0 : i32
    %c0_i32_1 = arith.constant 0 : i32
    return %c0_i32, %c0_i32_0 : i32, i32
  }
  func.func @transform_2(%arg0: i32) -> (i32, i32) {
    %c0_i32 = arith.constant 0 : i32
    %c0_i32_0 = arith.constant 0 : i32
    %c0_i32_1 = arith.constant 0 : i32
    return %c0_i32, %c0_i32_0 : i32, i32
  }
  func.func @transform_3(%arg0: i32) -> (i32, i32) {
    %c0_i32 = arith.constant 0 : i32
    %c0_i32_0 = arith.constant 0 : i32
    %c0_i32_1 = arith.constant 0 : i32
    return %c0_i32, %c0_i32_0 : i32, i32
  }
  func.func @transform_4(%arg0: i32) -> (i32, i32) {
    %c0_i32 = arith.constant 0 : i32
    %c0_i32_0 = arith.constant 0 : i32
    %c0_i32_1 = arith.constant 0 : i32
    return %c0_i32, %c0_i32_0 : i32, i32
  }
  func.func @transform_5(%arg0: i32) -> (i32, i32) {
    %c0_i32 = arith.constant 0 : i32
    %c0_i32_0 = arith.constant 0 : i32
    %c0_i32_1 = arith.constant 0 : i32
    return %c0_i32, %c0_i32_0 : i32, i32
  }
  func.func @transform_6(%arg0: i32) -> (i32, i32) {
    %c0_i32 = arith.constant 0 : i32
    %c0_i32_0 = arith.constant 0 : i32
    %c0_i32_1 = arith.constant 0 : i32
    return %c0_i32, %c0_i32_0 : i32, i32
  }
  func.func @transform_7(%arg0: i32) -> (i32, i32) {
    %c0_i32 = arith.constant 0 : i32
    %c0_i32_0 = arith.constant 0 : i32
    %c0_i32_1 = arith.constant 0 : i32
    return %c0_i32, %c0_i32_0 : i32, i32
  }
  func.func @transform_8(%arg0: i32) -> (i32, i32) {
    %c0_i32 = arith.constant 0 : i32
    %c0_i32_0 = arith.constant 0 : i32
    %c0_i32_1 = arith.constant 0 : i32
    return %c0_i32, %c0_i32_0 : i32, i32
  }
  func.func @transform_9(%arg0: i32) -> (i32, i32) {
    %c0_i32 = arith.constant 0 : i32
    %c0_i32_0 = arith.constant 0 : i32
    return %arg0, %c0_i32 : i32, i32
  }
}

</mosaic_0001>

<llo_original>
// kernel: tpu_custom_call.1
$region0: #{tpu_custom_call.1}
  #allocation0 [shape = 'u32[]', space=smem, size = 0x4, offset = 0x4, fixed_abs, tag = 'smem constant byte address 0x4 - core index']
  #allocation1 [shape = 'u32[144,128]{1,0:T(1,128)}', space=vmem, size = 0x12000, scoped, tag = 'internal scratch']
  %s0 = inlined_call_operand.vmem [shape: f32[8,16], index: 0, kind: input, shape index: {}]
  %s1 = inlined_call_operand.hbm [shape: bf16[16,128], index: 1, kind: input, shape index: {}]
  %s2 = inlined_call_operand.vmem [shape: f32[1,128], index: 2, kind: input, shape index: {}]
  %s3 = inlined_call_operand.vmem [shape: bf16[128,128], index: 3, kind: input, shape index: {}]
  %s4 = inlined_call_operand.vmem [shape: f32[1,128], index: 4, kind: input, shape index: {}]
  %s5 = inlined_call_operand.vmem [shape: bf16[128,64], index: 5, kind: input, shape index: {}]
  %s6 = inlined_call_operand.vmem [shape: f32[1,64], index: 6, kind: input, shape index: {}]
  %s7 = inlined_call_operand.vmem [shape: bf16[64,128], index: 7, kind: input, shape index: {}]
  %s8 = inlined_call_operand.vmem [shape: f32[1,128], index: 8, kind: input, shape index: {}]
  %s9 = inlined_call_operand.hbm [shape: f32[8,128], index: 9, kind: output, shape index: {}]
  %s10 = sld [smem:[#allocation0]]
  $region50: #{tpu_custom_call.1} parent=0
    _
  %s12 = ssub.s32 1, %s10
  %s13 = scalar_select 0, %s12, %s10
  $region1: #{tpu_custom_call.1} parent=0
    #allocation2 [shape = 'u8[4096]{0}', space=vmem, size = 0x1000, scoped, tag = 'input window, operand 1, single buffered']
    #allocation3 [shape = 's32[1]{0}', space=sflag, size = 0x4, scoped, tag = 'scoped memory for tpu_custom_call.1']
    #allocation4 [shape = 's32[1]{0}', space=sflag, size = 0x4, scoped, tag = 'scoped memory for tpu_custom_call.1']
    #allocation5 [shape = 'u8[4096]{0}', space=vmem, size = 0x1000, scoped, tag = 'output window, operand 0, single buffered']
    %14 = vsyncpa [#allocation3], 0
    %15 = vsyncpa [#allocation4], 0
    // Predicated region
    $region2: #{tpu_custom_call.1} parent=1 // pred_check
      _
    $region3: #{tpu_custom_call.1} parent=1 // pred_check_branch
      %17 = sbr.rel (0) target = $region5
    $region4: #{tpu_custom_call.1} parent=1 // pred_region
      _
    $region5: #{tpu_custom_call.1} parent=1 // pred_fallthru
      _
    // Predicated region
    $region6: #{tpu_custom_call.1} parent=1 // pred_check
      _
    $region7: #{tpu_custom_call.1} parent=1 // pred_check_branch
      %19 = sbr.rel (0) target = $region9
    $region8: #{tpu_custom_call.1} parent=1 // pred_region
      %s21 = ssub.s32 128, 128
      %22 = vsyncadd [#allocation3], %s21
      %s23 = sshll.u32 [#allocation2], 4
      %s24 = int_to_ptr.vmem [resolvable:$true] %s23
      %29 = dma.hbm_to_vmem [thread:$0]  %s1, 128, %s24, [#allocation3], 64, 64, 4
    $region9: #{tpu_custom_call.1} parent=1 // pred_fallthru
      _
    // Predicated region
    $region10: #{tpu_custom_call.1} parent=1 // pred_check
      _
    $region11: #{tpu_custom_call.1} parent=1 // pred_check_branch
      %31 = sbr.rel (0) target = $region13
    $region12: #{tpu_custom_call.1} parent=1 // pred_region
      _
    $region13: #{tpu_custom_call.1} parent=1 // pred_fallthru
      _
    // Predicated region
    $region14: #{tpu_custom_call.1} parent=1 // pred_check
      _
    $region15: #{tpu_custom_call.1} parent=1 // pred_check_branch
      %33 = sbr.rel (0) target = $region17
    $region16: #{tpu_custom_call.1} parent=1 // pred_region
      _
    $region17: #{tpu_custom_call.1} parent=1 // pred_fallthru
      _
    // Predicated region
    $region18: #{tpu_custom_call.1} parent=1 // pred_check
      _
    $region19: #{tpu_custom_call.1} parent=1 // pred_check_branch
      %35 = sbr.rel (0) target = $region21
    $region20: #{tpu_custom_call.1} parent=1 // pred_region
      _
    $region21: #{tpu_custom_call.1} parent=1 // pred_fallthru
      _
    // Predicated region
    $region22: #{tpu_custom_call.1} parent=1 // pred_check
      _
    $region23: #{tpu_custom_call.1} parent=1 // pred_check_branch
      %37 = sbr.rel (0) target = $region25
    $region24: #{tpu_custom_call.1} parent=1 // pred_region
      _
    $region25: #{tpu_custom_call.1} parent=1 // pred_fallthru
      _
    // Predicated region
    $region26: #{tpu_custom_call.1} parent=1 // pred_check
      _
    $region27: #{tpu_custom_call.1} parent=1 // pred_check_branch
      %39 = sbr.rel (0) target = $region29
    $region28: #{tpu_custom_call.1} parent=1 // pred_region
      _
    $region29: #{tpu_custom_call.1} parent=1 // pred_fallthru
      _
    // Predicated region
    $region30: #{tpu_custom_call.1} parent=1 // pred_check
      _
    $region31: #{tpu_custom_call.1} parent=1 // pred_check_branch
      %41 = sbr.rel (0) target = $region33
    $region32: #{tpu_custom_call.1} parent=1 // pred_region
      _
    $region33: #{tpu_custom_call.1} parent=1 // pred_fallthru
      _
    // Predicated region
    $region34: #{tpu_custom_call.1} parent=1 // pred_check
      _
    $region35: #{tpu_custom_call.1} parent=1 // pred_check_branch
      %43 = sbr.rel (0) target = $region37
    $region36: #{tpu_custom_call.1} parent=1 // pred_region
      _
    $region37: #{tpu_custom_call.1} parent=1 // pred_fallthru
      _
    // Predicated region
    $region38: #{tpu_custom_call.1} parent=1 // pred_check
      _
    $region39: #{tpu_custom_call.1} parent=1 // pred_check_branch
      %45 = sbr.rel (0) target = $region41
    $region40: #{tpu_custom_call.1} parent=1 // pred_region
      %46 = dma.done [#allocation3], 128
    $region41: #{tpu_custom_call.1} parent=1 // pred_fallthru
      _
    %v48 = vld [vmem:[%s0] sm:$0xff]
    %v49 = vpack.c.bf16 %v48, %v48
    %v50 = vld [vmem:[#allocation2] sm:$0xf]
    %v51 = vld [vmem:[#allocation2 + $0x4] sm:$0xf]
    %v52 = vld [vmem:[%s2] sm:$0x1]
    %v54 = vlaneseq
    %v55 = vshrl.u32 %v54, 7
    %v56 = vsub.s32 0, %v55
    %v57 = vrot.slane %v52, %v56
    %v61 = vunpack.c.l.b16 %v50
    %v62 = vunpack.c.l.b16 %v51
    %v63 = vpack.c.b16 %v62, %v61
    %vm65 = vcmask 130048
    %v67 = vsel %vm65, %v49, 0
    %69 = vmatprep.subr.bf16.mxu0 0
    %70 = vmatpush1.bf16.msra.mxu0 %v63
    %71 = vmatprep.subr.bf16.mxu0 0
    %72 = vmatpush1.bf16.msra.mxu0 0
    %73 = vmatprep.subr.bf16.mxu0 0
    %74 = vmatpush1.bf16.msra.mxu0 0
    %75 = vmatprep.subr.bf16.mxu0 0
    %76 = vmatpush1.bf16.msra.mxu0 0
    %77 = vmatprep.subr.bf16.mxu0 0
    %78 = vmatpush1.bf16.msra.mxu0 0
    %79 = vmatprep.subr.bf16.mxu0 0
    %80 = vmatpush1.bf16.msra.mxu0 0
    %81 = vmatprep.subr.bf16.mxu0 0
    %82 = vmatpush1.bf16.msra.mxu0 0
    %83 = vmatprep.subr.bf16.mxu0 0
    %84 = vmatpush1.bf16.msra.mxu0 0
    %85 = vmatprep.subr.bf16.mxu0 0
    %86 = vmatpush1.bf16.msra.mxu0 0
    %87 = vmatprep.subr.bf16.mxu0 0
    %88 = vmatpush1.bf16.msra.mxu0 0
    %89 = vmatprep.subr.bf16.mxu0 0
    %90 = vmatpush1.bf16.msra.mxu0 0
    %91 = vmatprep.subr.bf16.mxu0 0
    %92 = vmatpush1.bf16.msra.mxu0 0
    %93 = vmatprep.subr.bf16.mxu0 0
    %94 = vmatpush1.bf16.msra.mxu0 0
    %95 = vmatprep.subr.bf16.mxu0 0
    %96 = vmatpush1.bf16.msra.mxu0 0
    %97 = vmatprep.subr.bf16.mxu0 0
    %98 = vmatpush1.bf16.msra.mxu0 0
    %99 = vmatprep.subr.bf16.mxu0 0
    %100 = vmatpush1.bf16.msra.mxu0 0
    %101 = vmatprep.mubr.bf16.mxu0 0
    %102 = vmatmul.mubr.bf16.gmra.mrb[0].mxu0 %v67
    %v103 = vpop.f32.mrb[0].mxu0
    %v104 = vadd.f32 %v57, %v103
    %v105 = vpop.f32.mrb[0].mxu0
    %v106 = vpop.f32.mrb[0].mxu0
    %v107 = vpop.f32.mrb[0].mxu0
    %108 = vdwg.mxu0
    %v109 = vmax.f32 %v104, 0.0
    %v110 = vpack.c.bf16 %v109, %v109
    %v111 = vld [vmem:[%s3] sm:$0xf]
    %v112 = vld [vmem:[%s3 + $0x4] sm:$0xf]
    %v113 = vld [vmem:[%s3 + $0x8] sm:$0xf]
    %v114 = vld [vmem:[%s3 + $0xc] sm:$0xf]
    %v115 = vld [vmem:[%s3 + $0x10] sm:$0xf]
    %v116 = vld [vmem:[%s3 + $0x14] sm:$0xf]
    %v117 = vld [vmem:[%s3 + $0x18] sm:$0xf]
    %v118 = vld [vmem:[%s3 + $0x1c] sm:$0xf]
    %v119 = vld [vmem:[%s3 + $0x20] sm:$0xf]
    %v120 = vld [vmem:[%s3 + $0x24] sm:$0xf]
    %v121 = vld [vmem:[%s3 + $0x28] sm:$0xf]
    %v122 = vld [vmem:[%s3 + $0x2c] sm:$0xf]
    %v123 = vld [vmem:[%s3 + $0x30] sm:$0xf]
    %v124 = vld [vmem:[%s3 + $0x34] sm:$0xf]
    %v125 = vld [vmem:[%s3 + $0x38] sm:$0xf]
    %v126 = vld [vmem:[%s3 + $0x3c] sm:$0xf]
    %v127 = vld [vmem:[%s4] sm:$0x1]
    %v129 = vlaneseq
    %v130 = vshrl.u32 %v129, 7
    %v131 = vsub.s32 0, %v130
    %v132 = vrot.slane %v127, %v131
    %v150 = vunpack.c.l.b16 %v111
    %v151 = vunpack.c.l.b16 %v112
    %v152 = vunpack.c.l.b16 %v113
    %v153 = vunpack.c.l.b16 %v114
    %v154 = vunpack.c.l.b16 %v115
    %v155 = vunpack.c.l.b16 %v116
    %v156 = vunpack.c.l.b16 %v117
    %v157 = vunpack.c.l.b16 %v118
    %v158 = vunpack.c.l.b16 %v119
    %v159 = vunpack.c.l.b16 %v120
    %v160 = vunpack.c.l.b16 %v121
    %v161 = vunpack.c.l.b16 %v122
    %v162 = vunpack.c.l.b16 %v123
    %v163 = vunpack.c.l.b16 %v124
    %v164 = vunpack.c.l.b16 %v125
    %v165 = vunpack.c.l.b16 %v126
    %v166 = vpack.c.b16 %v151, %v150
    %v167 = vpack.c.b16 %v153, %v152
    %v168 = vpack.c.b16 %v155, %v154
    %v169 = vpack.c.b16 %v157, %v156
    %v170 = vpack.c.b16 %v159, %v158
    %v171 = vpack.c.b16 %v161, %v160
    %v172 = vpack.c.b16 %v163, %v162
    %v173 = vpack.c.b16 %v165, %v164
    %182 = vmatprep.subr.bf16.mxu0 0
    %183 = vmatpush1.bf16.msra.mxu0 %v166
    %184 = vmatprep.subr.bf16.mxu0 0
    %185 = vmatpush1.bf16.msra.mxu0 %v167
    %186 = vmatprep.subr.bf16.mxu0 0
    %187 = vmatpush1.bf16.msra.mxu0 %v168
    %188 = vmatprep.subr.bf16.mxu0 0
    %189 = vmatpush1.bf16.msra.mxu0 %v169
    %190 = vmatprep.subr.bf16.mxu0 0
    %191 = vmatpush1.bf16.msra.mxu0 %v170
    %192 = vmatprep.subr.bf16.mxu0 0
    %193 = vmatpush1.bf16.msra.mxu0 %v171
    %194 = vmatprep.subr.bf16.mxu0 0
    %195 = vmatpush1.bf16.msra.mxu0 %v172
    %196 = vmatprep.subr.bf16.mxu0 0
    %197 = vmatpush1.bf16.msra.mxu0 %v173
    %198 = vmatprep.subr.bf16.mxu0 0
    %199 = vmatpush1.bf16.msra.mxu0 0
    %200 = vmatprep.subr.bf16.mxu0 0
    %201 = vmatpush1.bf16.msra.mxu0 0
    %202 = vmatprep.subr.bf16.mxu0 0
    %203 = vmatpush1.bf16.msra.mxu0 0
    %204 = vmatprep.subr.bf16.mxu0 0
    %205 = vmatpush1.bf16.msra.mxu0 0
    %206 = vmatprep.subr.bf16.mxu0 0
    %207 = vmatpush1.bf16.msra.mxu0 0
    %208 = vmatprep.subr.bf16.mxu0 0
    %209 = vmatpush1.bf16.msra.mxu0 0
    %210 = vmatprep.subr.bf16.mxu0 0
    %211 = vmatpush1.bf16.msra.mxu0 0
    %212 = vmatprep.subr.bf16.mxu0 0
    %213 = vmatpush1.bf16.msra.mxu0 0
    %214 = vmatprep.mubr.bf16.mxu0 0
    %215 = vmatmul.mubr.bf16.gmra.mrb[0].mxu0 %v110
    %v216 = vpop.f32.mrb[0].mxu0
    %v217 = vadd.f32 %v132, %v216
    %v218 = vpop.f32.mrb[0].mxu0
    %v219 = vpop.f32.mrb[0].mxu0
    %v220 = vpop.f32.mrb[0].mxu0
    %221 = vdwg.mxu0
    %v222 = vmax.f32 %v217, 0.0
    %v223 = vpack.c.bf16 %v222, %v222
    %v224 = vld [vmem:[%s5] sm:$0xf]
    %v225 = vld [vmem:[%s5 + $0x4] sm:$0xf]
    %v226 = vld [vmem:[%s5 + $0x8] sm:$0xf]
    %v227 = vld [vmem:[%s5 + $0xc] sm:$0xf]
    %v228 = vld [vmem:[%s5 + $0x10] sm:$0xf]
    %v229 = vld [vmem:[%s5 + $0x14] sm:$0xf]
    %v230 = vld [vmem:[%s5 + $0x18] sm:$0xf]
    %v231 = vld [vmem:[%s5 + $0x1c] sm:$0xf]
    %v232 = vld [vmem:[%s5 + $0x20] sm:$0xf]
    %v233 = vld [vmem:[%s5 + $0x24] sm:$0xf]
    %v234 = vld [vmem:[%s5 + $0x28] sm:$0xf]
    %v235 = vld [vmem:[%s5 + $0x2c] sm:$0xf]
    %v236 = vld [vmem:[%s5 + $0x30] sm:$0xf]
    %v237 = vld [vmem:[%s5 + $0x34] sm:$0xf]
    %v238 = vld [vmem:[%s5 + $0x38] sm:$0xf]
    %v239 = vld [vmem:[%s5 + $0x3c] sm:$0xf]
    %v240 = vld [vmem:[%s6] sm:$0x1]
    %v242 = vlaneseq
    %v243 = vshrl.u32 %v242, 7
    %v244 = vsub.s32 0, %v243
    %v245 = vrot.slane %v240, %v244
    %v263 = vunpack.c.l.b16 %v224
    %v264 = vunpack.c.l.b16 %v225
    %v265 = vunpack.c.l.b16 %v226
    %v266 = vunpack.c.l.b16 %v227
    %v267 = vunpack.c.l.b16 %v228
    %v268 = vunpack.c.l.b16 %v229
    %v269 = vunpack.c.l.b16 %v230
    %v270 = vunpack.c.l.b16 %v231
    %v271 = vunpack.c.l.b16 %v232
    %v272 = vunpack.c.l.b16 %v233
    %v273 = vunpack.c.l.b16 %v234
    %v274 = vunpack.c.l.b16 %v235
    %v275 = vunpack.c.l.b16 %v236
    %v276 = vunpack.c.l.b16 %v237
    %v277 = vunpack.c.l.b16 %v238
    %v278 = vunpack.c.l.b16 %v239
    %v279 = vpack.c.b16 %v264, %v263
    %v280 = vpack.c.b16 %v266, %v265
    %v281 = vpack.c.b16 %v268, %v267
    %v282 = vpack.c.b16 %v270, %v269
    %v283 = vpack.c.b16 %v272, %v271
    %v284 = vpack.c.b16 %v274, %v273
    %v285 = vpack.c.b16 %v276, %v275
    %v286 = vpack.c.b16 %v278, %v277
    %295 = vmatprep.subr.bf16.mxu0 0
    %296 = vmatpush1.bf16.msra.mxu0 %v279
    %297 = vmatprep.subr.bf16.mxu0 0
    %298 = vmatpush1.bf16.msra.mxu0 %v280
    %299 = vmatprep.subr.bf16.mxu0 0
    %300 = vmatpush1.bf16.msra.mxu0 %v281
    %301 = vmatprep.subr.bf16.mxu0 0
    %302 = vmatpush1.bf16.msra.mxu0 %v282
    %303 = vmatprep.subr.bf16.mxu0 0
    %304 = vmatpush1.bf16.msra.mxu0 %v283
    %305 = vmatprep.subr.bf16.mxu0 0
    %306 = vmatpush1.bf16.msra.mxu0 %v284
    %307 = vmatprep.subr.bf16.mxu0 0
    %308 = vmatpush1.bf16.msra.mxu0 %v285
    %309 = vmatprep.subr.bf16.mxu0 0
    %310 = vmatpush1.bf16.msra.mxu0 %v286
    %311 = vmatprep.subr.bf16.mxu0 0
    %312 = vmatpush1.bf16.msra.mxu0 0
    %313 = vmatprep.subr.bf16.mxu0 0
    %314 = vmatpush1.bf16.msra.mxu0 0
    %315 = vmatprep.subr.bf16.mxu0 0
    %316 = vmatpush1.bf16.msra.mxu0 0
    %317 = vmatprep.subr.bf16.mxu0 0
    %318 = vmatpush1.bf16.msra.mxu0 0
    %319 = vmatprep.subr.bf16.mxu0 0
    %320 = vmatpush1.bf16.msra.mxu0 0
    %321 = vmatprep.subr.bf16.mxu0 0
    %322 = vmatpush1.bf16.msra.mxu0 0
    %323 = vmatprep.subr.bf16.mxu0 0
    %324 = vmatpush1.bf16.msra.mxu0 0
    %325 = vmatprep.subr.bf16.mxu0 0
    %326 = vmatpush1.bf16.msra.mxu0 0
    %327 = vmatprep.mubr.bf16.mxu0 0
    %328 = vmatmul.mubr.bf16.gmra.mrb[0].mxu0 %v223
    %v329 = vpop.f32.mrb[0].mxu0
    %v330 = vadd.f32 %v245, %v329
    %v331 = vpop.f32.mrb[0].mxu0
    %v332 = vpop.f32.mrb[0].mxu0
    %v333 = vpop.f32.mrb[0].mxu0
    %334 = vdwg.mxu0
    %v335 = vmax.f32 %v330, 0.0
    %v336 = vpack.c.bf16 %v335, %v335
    %v337 = vld [vmem:[%s7] sm:$0xf]
    %v338 = vld [vmem:[%s7 + $0x4] sm:$0xf]
    %v339 = vld [vmem:[%s7 + $0x8] sm:$0xf]
    %v340 = vld [vmem:[%s7 + $0xc] sm:$0xf]
    %v341 = vld [vmem:[%s7 + $0x10] sm:$0xf]
    %v342 = vld [vmem:[%s7 + $0x14] sm:$0xf]
    %v343 = vld [vmem:[%s7 + $0x18] sm:$0xf]
    %v344 = vld [vmem:[%s7 + $0x1c] sm:$0xf]
    %v345 = vld [vmem:[%s8] sm:$0x1]
    %v347 = vlaneseq
    %v348 = vshrl.u32 %v347, 7
    %v349 = vsub.s32 0, %v348
    %v350 = vrot.slane %v345, %v349
    %v360 = vunpack.c.l.b16 %v337
    %v361 = vunpack.c.l.b16 %v338
    %v362 = vunpack.c.l.b16 %v339
    %v363 = vunpack.c.l.b16 %v340
    %v364 = vunpack.c.l.b16 %v341
    %v365 = vunpack.c.l.b16 %v342
    %v366 = vunpack.c.l.b16 %v343
    %v367 = vunpack.c.l.b16 %v344
    %v368 = vpack.c.b16 %v361, %v360
    %v369 = vpack.c.b16 %v363, %v362
    %v370 = vpack.c.b16 %v365, %v364
    %v371 = vpack.c.b16 %v367, %v366
    %vm376 = vcmask 523264
    %v378 = vsel %vm376, %v336, 0
    %380 = vmatprep.subr.bf16.mxu0 0
    %381 = vmatpush1.bf16.msra.mxu0 %v368
    %382 = vmatprep.subr.bf16.mxu0 0
    %383 = vmatpush1.bf16.msra.mxu0 %v369
    %384 = vmatprep.subr.bf16.mxu0 0
    %385 = vmatpush1.bf16.msra.mxu0 %v370
    %386 = vmatprep.subr.bf16.mxu0 0
    %387 = vmatpush1.bf16.msra.mxu0 %v371
    %388 = vmatprep.subr.bf16.mxu0 0
    %389 = vmatpush1.bf16.msra.mxu0 0
    %390 = vmatprep.subr.bf16.mxu0 0
    %391 = vmatpush1.bf16.msra.mxu0 0
    %392 = vmatprep.subr.bf16.mxu0 0
    %393 = vmatpush1.bf16.msra.mxu0 0
    %394 = vmatprep.subr.bf16.mxu0 0
    %395 = vmatpush1.bf16.msra.mxu0 0
    %396 = vmatprep.subr.bf16.mxu0 0
    %397 = vmatpush1.bf16.msra.mxu0 0
    %398 = vmatprep.subr.bf16.mxu0 0
    %399 = vmatpush1.bf16.msra.mxu0 0
    %400 = vmatprep.subr.bf16.mxu0 0
    %401 = vmatpush1.bf16.msra.mxu0 0
    %402 = vmatprep.subr.bf16.mxu0 0
    %403 = vmatpush1.bf16.msra.mxu0 0
    %404 = vmatprep.subr.bf16.mxu0 0
    %405 = vmatpush1.bf16.msra.mxu0 0
    %406 = vmatprep.subr.bf16.mxu0 0
    %407 = vmatpush1.bf16.msra.mxu0 0
    %408 = vmatprep.subr.bf16.mxu0 0
    %409 = vmatpush1.bf16.msra.mxu0 0
    %410 = vmatprep.subr.bf16.mxu0 0
    %411 = vmatpush1.bf16.msra.mxu0 0
    %412 = vmatprep.mubr.bf16.mxu0 0
    %413 = vmatmul.mubr.bf16.gmra.mrb[0].mxu0 %v378
    %v414 = vpop.f32.mrb[0].mxu0
    %v415 = vadd.f32 %v350, %v414
    %v416 = vpop.f32.mrb[0].mxu0
    %v417 = vpop.f32.mrb[0].mxu0
    %v418 = vpop.f32.mrb[0].mxu0
    %419 = vdwg.mxu0
    %v420 = vlaneseq
    %v421 = vand.u32 %v420, 127
    %vm422 = vcmp.lt.s32.totalorder %v421, 4
    %vm423 = vcmp.eq.s32.totalorder %v421, 4
    %v424 = vsel %vm423, %v415, 0.0
    %425 = vadd.xlane.f32.xlu0 %v424
    %v426 = vpop.xlane.xlu0 %425
    %v427 = vsel %vm422, %v415, 0.0
    %428 = vadd.xlane.f32.xlu0 %v427
    %v429 = vpop.xlane.xlu0 %428
    %v430 = vadd.f32 %v415, %v426
    %v431 = vsel %vm422, %v430, 0.0
    %v432 = vsel %vm423, %v429, %v431
    %433 = vst [vmem:[#allocation5] sm:$0xff] %v432
    // Predicated region
    $region42: #{tpu_custom_call.1} parent=1 // pred_check
      _
    $region43: #{tpu_custom_call.1} parent=1 // pred_check_branch
      %435 = sbr.rel (0) target = $region45
    $region44: #{tpu_custom_call.1} parent=1 // pred_region
      %s437 = ssub.s32 128, 128
      %438 = vsyncadd [#allocation4], %s437
      %s440 = sshll.u32 [#allocation5], 4
      %s441 = int_to_ptr.vmem [resolvable:$true] %s440
      %443 = dma.vmem_to_hbm [thread:$0]  %s441, 128, %s9, [#allocation4]
    $region45: #{tpu_custom_call.1} parent=1 // pred_fallthru
      _
    // Predicated region
    $region46: #{tpu_custom_call.1} parent=1 // pred_check
      _
    $region47: #{tpu_custom_call.1} parent=1 // pred_check_branch
      %445 = sbr.rel (0) target = $region49
    $region48: #{tpu_custom_call.1} parent=1 // pred_region
      %446 = dma.done [#allocation4], 128
    $region49: #{tpu_custom_call.1} parent=1 // pred_fallthru
      _
    %447 = vsyncpa [#allocation3], 1
    %448 = vsyncpa [#allocation4], 1

</llo_original>
